<compile_context>
chip_gen: v6e
topology: v6e:2x2x1
jax: 0.10.0
libtpu: 0.0.40
codegen_flags: <defaults>
</compile_context>

<pallas_src>
import functools

import jax
import jax.numpy as jnp
from jax import lax
from jax.experimental import pallas as pl
from jax.experimental.pallas import tpu as pltpu


def _dice_sums_kernel(score_ref, target_ref, out_ref, *, hw, need_mask, softmax):
    # score_ref : (C, TM)  native dtype tile of one batch element
    # target_ref: (1, TM)  int32 class labels for the same tile
    # out_ref   : (C, 3)   f32 [intersect, z_sum, y_sum], resident across the m axis
    m = pl.program_id(1)
    c, tm = score_ref.shape

    @pl.when(m == 0)
    def _():
        out_ref[...] = jnp.zeros_like(out_ref)

    s = score_ref[...].astype(jnp.float32)          # (C, TM)
    t = target_ref[...]                             # (1, TM) int32

    if softmax:
        # Class-axis softmax fused into the tile (torch.softmax(inputs, dim=1)).
        s_max = jnp.max(s, axis=0, keepdims=True)
        e = jnp.exp(s - s_max)
        s = e / jnp.sum(e, axis=0, keepdims=True)

    class_ids = lax.broadcasted_iota(jnp.int32, (c, 1), 0)      # (C, 1)
    match = t == class_ids                                      # (C, TM) bool

    if need_mask:
        # Last tile is ragged: mask lanes past the true spatial extent.
        lane = lax.broadcasted_iota(jnp.int32, (1, tm), 1)
        valid = (lane + m * tm) < hw                            # (1, TM)
        s = jnp.where(valid, s, 0.0)
        match = jnp.logical_and(match, valid)

    intersect = jnp.sum(jnp.where(match, s, 0.0), axis=1, keepdims=True)   # (C, 1)
    z_sum = jnp.sum(s * s, axis=1, keepdims=True)                          # (C, 1)
    y_sum = jnp.sum(match.astype(jnp.float32), axis=1, keepdims=True)      # (C, 1)

    out_ref[...] += jnp.concatenate([intersect, z_sum, y_sum], axis=1)


def _choose_tm(n_classes, hw, score_itemsize, vmem_budget_bytes=12 * 1024 * 1024):
    """Pick the M-tile width: fill a healthy chunk of VMEM, lane-aligned.

    Sized conservatively so the double-buffered DMA blocks plus the kernel's
    f32 temporaries fit well inside the scoped-VMEM default on v5e/v6e/v7x.
    """
    c_pad = ((n_classes + 7) // 8) * 8        # sublane padding of the (C, tm) block
    per_lane = (2 * c_pad * score_itemsize    # double-buffered score input
                + 2 * 8 * 4                   # double-buffered int32 target input
                + 4 * c_pad * 4)              # headroom for f32 temporaries
    tm = (vmem_budget_bytes // per_lane) // 128 * 128
    return int(max(128, min(tm, 32 * 1024)))


def _dice_partial_sums(score, tgt, tm, softmax):
    N, C, HW = score.shape
    num_m = pl.cdiv(HW, tm)
    kernel = functools.partial(
        _dice_sums_kernel, hw=HW, need_mask=(HW % tm != 0), softmax=softmax)
    return pl.pallas_call(
        kernel,
        out_shape=jax.ShapeDtypeStruct((N, C, 3), jnp.float32),
        grid_spec=pltpu.PrefetchScalarGridSpec(
            num_scalar_prefetch=0,
            grid=(N, num_m),
            in_specs=[
                pl.BlockSpec((None, C, tm), lambda n, m: (n, 0, m)),   # score tile
                pl.BlockSpec((None, 1, tm), lambda n, m: (n, 0, m)),   # label tile
            ],
            out_specs=pl.BlockSpec((None, C, 3), lambda n, m: (n, 0, 0)),
        ),
        compiler_params=pltpu.CompilerParams(
            dimension_semantics=("parallel", "arbitrary"),
            vmem_limit_bytes=32 * 1024 * 1024,
        ),
    )(score, tgt)


def dice_loss(inputs, target, n_classes, weight=None, softmax=False, tm=None):
    """Forward pass of DiceLoss.

    inputs : (N, C, H, W) float (f32/bf16) -- per-class scores / probabilities
    target : (N, H, W)    int              -- class labels in [0, n_classes)
    Returns a scalar float32 loss.
    """
    N, C, H, W = inputs.shape
    assert C == n_classes, f"predict C={C} & n_classes={n_classes} do not match"
    HW = H * W

    # Free reshapes only -- no transpose, no pad, no dtype upcast in HBM.
    score = inputs.reshape(N, C, HW)
    tgt = target.reshape(N, 1, HW).astype(jnp.int32)

    if tm is None:
        tm = _choose_tm(C, HW, jnp.dtype(score.dtype).itemsize)
    if HW <= tm:
        tm = HW                              # single full-width tile per batch element
    else:
        tm = max(128, (tm // 128) * 128)     # lane-aligned tile; tail masked in-kernel

    sums = _dice_partial_sums(score, tgt, tm, softmax)      # (N, C, 3)
    sums = jnp.sum(sums, axis=0)                            # (C, 3)
    intersect, z_sum, y_sum = sums[:, 0], sums[:, 1], sums[:, 2]

    smooth = 1e-05
    dice = 1.0 - (2.0 * intersect + smooth) / (z_sum + y_sum + smooth)

    if weight is None:
        weight = jnp.ones((n_classes,), jnp.float32)
    else:
        weight = jnp.asarray(weight, jnp.float32)

    return jnp.sum(dice * weight) / n_classes


def _dice_loss_ref(inputs, target, n_classes, weight=None, softmax=False):
    """Pure-JAX reference of the PyTorch math (for verification only)."""
    x = inputs.astype(jnp.float32)
    if softmax:
        x = jax.nn.softmax(x, axis=1)
    onehot = (target[:, None] == jnp.arange(n_classes)[None, :, None, None]
              ).astype(jnp.float32)
    if weight is None:
        weight = [1.0] * n_classes
    smooth = 1e-05
    loss = 0.0
    for i in range(n_classes):
        s, t = x[:, i], onehot[:, i]
        d = 1.0 - (2.0 * jnp.sum(s * t) + smooth) / (
            jnp.sum(s * s) + jnp.sum(t * t) + smooth)
        loss = loss + d * weight[i]
    return loss / n_classes


if __name__ == "__main__":
    key = jax.random.PRNGKey(0)
    k1, k2, k3, k4 = jax.random.split(key, 4)

    # Case 1: standard small shape, softmax=False (matches the module defaults).
    N, C, H, W = 2, 4, 16, 16
    x = jax.random.uniform(k1, (N, C, H, W), dtype=jnp.float32)
    y = jax.random.randint(k2, (N, H, W), 0, C, dtype=jnp.int32)
    loss = jax.jit(functools.partial(dice_loss, n_classes=C, softmax=False))(x, y)
    jax.block_until_ready(loss)
    ref = _dice_loss_ref(x, y, C, softmax=False)
    assert jnp.allclose(loss, ref, rtol=1e-5, atol=1e-6), (loss, ref)

    # Case 2: fused in-kernel class-axis softmax.
    loss_sm = jax.jit(functools.partial(dice_loss, n_classes=C, softmax=True))(x, y)
    jax.block_until_ready(loss_sm)
    ref_sm = _dice_loss_ref(x, y, C, softmax=True)
    assert jnp.allclose(loss_sm, ref_sm, rtol=1e-5, atol=1e-5), (loss_sm, ref_sm)

    # Case 3: ragged spatial extent + multi-tile reduction (exercises the tail mask).
    N2, H2, W2 = 2, 18, 18
    x2 = jax.random.uniform(k3, (N2, C, H2, W2), dtype=jnp.float32)
    y2 = jax.random.randint(k4, (N2, H2, W2), 0, C, dtype=jnp.int32)
    loss2 = jax.jit(functools.partial(dice_loss, n_classes=C, softmax=False, tm=128))(x2, y2)
    jax.block_until_ready(loss2)
    ref2 = _dice_loss_ref(x2, y2, C, softmax=False)
    assert jnp.allclose(loss2, ref2, rtol=1e-5, atol=1e-6), (loss2, ref2)

    print("KERNEL_OK")
</pallas_src>

<mosaic_0001>
module attributes {stable_mosaic.version = 11 : i64} {
  func.func @_dice_sums_kernel(%arg0: i32, %arg1: i32, %arg2: memref<1x4x256xf32, #tpu.memory_space<vmem>>, %arg3: memref<1x1x256xi32, #tpu.memory_space<vmem>>, %arg4: memref<1x4x3xf32, #tpu.memory_space<vmem>>) attributes {dimension_semantics = [#tpu.dimension_semantics<parallel>, #tpu.dimension_semantics<arbitrary>], iteration_bounds = array<i64: 2, 1>, scalar_prefetch = 0 : i64, scratch_operands = 0 : i64, tpu.core_type = #tpu.core_type<tc>, window_params = [{transform_indices = @transform_0, window_bounds = array<i64: 1, 4, 256>}, {transform_indices = @transform_1, window_bounds = array<i64: 1, 1, 256>}, {transform_indices = @transform_2, window_bounds = array<i64: 1, 4, 3>}]} {
    %c0_i32 = arith.constant 0 : i32
    %0 = arith.cmpi eq, %arg1, %c0_i32 : i32
    %1 = arith.extui %0 : i1 to i32
    %c0_i32_0 = arith.constant 0 : i32
    %2 = arith.cmpi ne, %1, %c0_i32_0 : i32
    scf.if %2 {
      %cst_15 = arith.constant 0.000000e+00 : f32
      %29 = vector.broadcast %cst_15 : f32 to vector<4x3xf32>
      %c0_16 = arith.constant 0 : index
      %c0_17 = arith.constant 0 : index
      %c0_18 = arith.constant 0 : index
      %30 = vector.load %arg4[%c0_16, %c0_17, %c0_18] : memref<1x4x3xf32, #tpu.memory_space<vmem>>, vector<1x4x3xf32>
      %31 = vector.shape_cast %30 : vector<1x4x3xf32> to vector<4x3xf32>
      %32 = vector.shape_cast %29 : vector<4x3xf32> to vector<1x4x3xf32>
      tpu.vector_store %arg4[%c0_16, %c0_17, %c0_18], %32 {strides = array<i32>} : memref<1x4x3xf32, #tpu.memory_space<vmem>>, vector<1x4x3xf32>,
    } else {
    }
    %c0 = arith.constant 0 : index
    %c0_1 = arith.constant 0 : index
    %c0_2 = arith.constant 0 : index
    %3 = vector.load %arg2[%c0, %c0_1, %c0_2] : memref<1x4x256xf32, #tpu.memory_space<vmem>>, vector<1x4x256xf32>
    %4 = vector.shape_cast %3 : vector<1x4x256xf32> to vector<4x256xf32>
    %c0_3 = arith.constant 0 : index
    %c0_4 = arith.constant 0 : index
    %c0_5 = arith.constant 0 : index
    %5 = vector.load %arg3[%c0_3, %c0_4, %c0_5] : memref<1x1x256xi32, #tpu.memory_space<vmem>>, vector<1x1x256xi32>
    %6 = vector.shape_cast %5 : vector<1x1x256xi32> to vector<1x256xi32>
    %7 = tpu.iota {dimensions = array<i32: 0>} : vector<4x1xi32>
    %8 = vector.broadcast %6 : vector<1x256xi32> to vector<4x256xi32>
    %9 = vector.broadcast %7 : vector<4x1xi32> to vector<4x256xi32>
    %10 = arith.cmpi eq, %8, %9 : vector<4x256xi32>
    %cst = arith.constant 0.000000e+00 : f32
    %11 = vector.broadcast %cst : f32 to vector<4x256xf32>
    %12 = arith.select %10, %4, %11 : vector<4x256xi1>, vector<4x256xf32>
    %cst_6 = arith.constant dense<0.000000e+00> : vector<4xf32>
    %13 = vector.multi_reduction <add>, %12, %cst_6 [1] : vector<4x256xf32> to vector<4xf32>
    %14 = vector.shape_cast %13 : vector<4xf32> to vector<4x1xf32>
    %15 = arith.mulf %4, %4 : vector<4x256xf32>
    %cst_7 = arith.constant dense<0.000000e+00> : vector<4xf32>
    %16 = vector.multi_reduction <add>, %15, %cst_7 [1] : vector<4x256xf32> to vector<4xf32>
    %17 = vector.shape_cast %16 : vector<4xf32> to vector<4x1xf32>
    %18 = arith.extui %10 : vector<4x256xi1> to vector<4x256xi32>
    %19 = arith.sitofp %18 : vector<4x256xi32> to vector<4x256xf32>
    %cst_8 = arith.constant dense<0.000000e+00> : vector<4xf32>
    %20 = vector.multi_reduction <add>, %19, %cst_8 [1] : vector<4x256xf32> to vector<4xf32>
    %21 = vector.shape_cast %20 : vector<4xf32> to vector<4x1xf32>
    %c0_9 = arith.constant 0 : index
    %c0_10 = arith.constant 0 : index
    %c0_11 = arith.constant 0 : index
    %22 = vector.load %arg4[%c0_9, %c0_10, %c0_11] : memref<1x4x3xf32, #tpu.memory_space<vmem>>, vector<1x4x3xf32>
    %23 = vector.shape_cast %22 : vector<1x4x3xf32> to vector<4x3xf32>
    %24 = tpu.concatenate %14, %17, %21 in 1 : vector<4x1xf32>, vector<4x1xf32>, vector<4x1xf32> -> vector<4x3xf32>
    %25 = arith.addf %23, %24 : vector<4x3xf32>
    %c0_12 = arith.constant 0 : index
    %c0_13 = arith.constant 0 : index
    %c0_14 = arith.constant 0 : index
    %26 = vector.load %arg4[%c0_12, %c0_13, %c0_14] : memref<1x4x3xf32, #tpu.memory_space<vmem>>, vector<1x4x3xf32>
    %27 = vector.shape_cast %26 : vector<1x4x3xf32> to vector<4x3xf32>
    %28 = vector.shape_cast %25 : vector<4x3xf32> to vector<1x4x3xf32>
    tpu.vector_store %arg4[%c0_12, %c0_13, %c0_14], %28 {strides = array<i32>} : memref<1x4x3xf32, #tpu.memory_space<vmem>>, vector<1x4x3xf32>,
    return
  }
  func.func @transform_0(%arg0: i32, %arg1: i32) -> (i32, i32, i32) {
    %c0_i32 = arith.constant 0 : i32
    %c0_i32_0 = arith.constant 0 : i32
    return %arg0, %c0_i32, %arg1 : i32, i32, i32
  }
  func.func @transform_1(%arg0: i32, %arg1: i32) -> (i32, i32, i32) {
    %c0_i32 = arith.constant 0 : i32
    %c0_i32_0 = arith.constant 0 : i32
    return %arg0, %c0_i32, %arg1 : i32, i32, i32
  }
  func.func @transform_2(%arg0: i32, %arg1: i32) -> (i32, i32, i32) {
    %c0_i32 = arith.constant 0 : i32
    %c0_i32_0 = arith.constant 0 : i32
    %c0_i32_1 = arith.constant 0 : i32
    return %arg0, %c0_i32, %c0_i32_0 : i32, i32, i32
  }
}

</mosaic_0001>

<llo_original>
// kernel: dice_loss.1
$region0: #{dice_loss.1}
  #allocation0 [shape = 'u32[]', space=smem, size = 0x4, offset = 0x4, fixed_abs, tag = 'smem constant byte address 0x4 - core index']
  #allocation1 [shape = 'u32[144,128]{1,0:T(1,128)}', space=vmem, size = 0x12000, scoped, tag = 'internal scratch']
  %s0 = inlined_call_operand.vmem [shape: f32[2,4,256], index: 0, kind: input, shape index: {}]
  %s1 = inlined_call_operand.vmem [shape: s32[2,1,256], index: 1, kind: input, shape index: {}]
  %s2 = inlined_call_operand.vmem [shape: f32[2,4,3], index: 2, kind: output, shape index: {}]
  %s3 = sld [smem:[#allocation0]]
  $region45: #{dice_loss.1} parent=0
    _
  %s5 = ssub.s32 1, %s3
  %s6 = scalar_select 0, %s5, %s3
  loop: start=0, step=1, limit=4
  $region2: #{dice_loss.1} parent=0 // loop_pre_header
    _
  $region3: #{dice_loss.1} parent=0 // loop_header
    %s8 = sphi 0, %s12
    %p9 = scmp.ge.s32.totalorder %s8, 4
    %s15 = sphi 0, %s27
    %s16 = sphi 0, %s23
    %s17 = sphi 0, %s15
    %s18 = sphi 0, %s16
    %s19 = sphi 0, %s17
    %s20 = sphi 0, %s18
    %s32 = sphi 0, %s34
    %s35 = sphi 0, %s32
    %s36 = sphi 0, %s35
    %s52 = sphi 0, %s36
    %s60 = sphi 0, %s62
    %s63 = sphi 0, %s60
    %s64 = sphi 0, %s63
    %s80 = sphi 0, %s64
    %s86 = sphi 0, %s88
    %s89 = sphi 0, %s86
    %s90 = sphi 0, %s89
    %s106 = sphi 0, %s90
  $region4: #{dice_loss.1} parent=0 // loop_header_branch
    %11 = sbr.rel (%p9) target = $region8
  $region5: #{dice_loss.1} parent=0 // loop_body
    %s13 = ssub.s32 %s8, 1
    %s14 = ssub.s32 %s8, 2
    %s21 = sadd.s32 1, %s16
    %p22 = scmp.ge.s32.totalorder %s21, 1
    %s23 = scalar_select %p22, 0, %s21
    %s24 = sadd.s32 1, %s15
    %s25 = scalar_select %p22, %s24, %s15
    %p26 = scmp.ge.s32.totalorder %s25, 2
    %s27 = scalar_select %p26, 0, %s25
    %s28 = ssub.s32 %s15, %s27
    %s29 = ssub.s32 %s16, %s23
    %s30 = sor.u32 %s28, %s29
    %p31 = scmp.eq.s32.totalorder %s30, 0
    %s33 = sadd.s32 %s32, 1
    %s34 = scalar_select %p31, %s32, %s33
    %p37 = pneg %p31
    %p38 = scmp.eq.s32.totalorder %s8, 1
    %p39 = por %p37, %p38
    %p40 = scmp.ne.s32.totalorder %s32, %s35
    %p41 = scmp.eq.s32.totalorder %s8, 0
    %p42 = por %p40, %p41
    %p43 = scmp.ne.s32.totalorder %s32, %s35
    %p44 = scmp.eq.s32.totalorder %s13, 1
    %p45 = por %p43, %p44
    %p46 = scmp.ne.s32.totalorder %s35, %s36
    %p47 = scmp.eq.s32.totalorder %s13, 0
    %p48 = por %p46, %p47
    %p49 = scmp.ne.s32.totalorder %s35, %s36
    %p50 = scmp.eq.s32.totalorder %s14, 1
    %p51 = por %p49, %p50
    %p53 = scmp.ne.s32.totalorder %s36, %s52
    %p54 = scmp.eq.s32.totalorder %s14, 0
    %p55 = por %p53, %p54
    %s56 = ssub.s32 %s15, %s27
    %s57 = ssub.s32 %s16, %s23
    %s58 = sor.u32 %s56, %s57
    %p59 = scmp.eq.s32.totalorder %s58, 0
    %s61 = sadd.s32 %s60, 1
    %s62 = scalar_select %p59, %s60, %s61
    %p65 = pneg %p59
    %p66 = scmp.eq.s32.totalorder %s8, 1
    %p67 = por %p65, %p66
    %p68 = scmp.ne.s32.totalorder %s60, %s63
    %p69 = scmp.eq.s32.totalorder %s8, 0
    %p70 = por %p68, %p69
    %p71 = scmp.ne.s32.totalorder %s60, %s63
    %p72 = scmp.eq.s32.totalorder %s13, 1
    %p73 = por %p71, %p72
    %p74 = scmp.ne.s32.totalorder %s63, %s64
    %p75 = scmp.eq.s32.totalorder %s13, 0
    %p76 = por %p74, %p75
    %p77 = scmp.ne.s32.totalorder %s63, %s64
    %p78 = scmp.eq.s32.totalorder %s14, 1
    %p79 = por %p77, %p78
    %p81 = scmp.ne.s32.totalorder %s64, %s80
    %p82 = scmp.eq.s32.totalorder %s14, 0
    %p83 = por %p81, %p82
    %s84 = ssub.s32 %s15, %s27
    %p85 = scmp.eq.s32.totalorder %s84, 0
    %s87 = sadd.s32 %s86, 1
    %s88 = scalar_select %p85, %s86, %s87
    %p91 = pneg %p85
    %p92 = scmp.eq.s32.totalorder %s8, 1
    %p93 = por %p91, %p92
    %p94 = scmp.ne.s32.totalorder %s86, %s89
    %p95 = scmp.eq.s32.totalorder %s8, 0
    %p96 = por %p94, %p95
    %p97 = scmp.ne.s32.totalorder %s86, %s89
    %p98 = scmp.eq.s32.totalorder %s13, 1
    %p99 = por %p97, %p98
    %p100 = scmp.ne.s32.totalorder %s89, %s90
    %p101 = scmp.eq.s32.totalorder %s13, 0
    %p102 = por %p100, %p101
    %p103 = scmp.ne.s32.totalorder %s89, %s90
    %p104 = scmp.eq.s32.totalorder %s14, 1
    %p105 = por %p103, %p104
    %p107 = scmp.ne.s32.totalorder %s90, %s106
    %p108 = scmp.eq.s32.totalorder %s14, 0
    %p109 = por %p107, %p108
    %p110 = scmp.le.s32.totalorder 1, %s8
    %p111 = scmp.lt.s32.totalorder %s8, 3
    %p112 = pnand %p110, %p111
    %p113 = pneg %p112
    // Predicated region
    $region9: #{dice_loss.1} parent=5 // pred_check
      _
    $region10: #{dice_loss.1} parent=5 // pred_check_branch
      %115 = sbr.rel (%p112) target = $region12
    $region11: #{dice_loss.1} parent=5 // pred_region
      %s116 = ssub.s32 %s8, 1
    $region12: #{dice_loss.1} parent=5 // pred_fallthru
      _
    %p117 = scmp.lt.s32.totalorder %s8, 2
    // Predicated region
    $region13: #{dice_loss.1} parent=5 // pred_check
      %p118 = pneg %p117
    $region14: #{dice_loss.1} parent=5 // pred_check_branch
      %120 = sbr.rel (%p118) target = $region16
    $region15: #{dice_loss.1} parent=5 // pred_region
      // Predicated region
      $region17: #{dice_loss.1} parent=15 // pred_check
        %p121 = pneg %p42
      $region18: #{dice_loss.1} parent=15 // pred_check_branch
        %123 = sbr.rel (%p121) target = $region20
      $region19: #{dice_loss.1} parent=15 // pred_region
        %s124 = smul.u32 2, %s16
        %p125 = scmp.lt.s32.totalorder %s15, 1
        %s126 = scalar_select %p125, %s15, 1
        %p127 = scmp.lt.s32.totalorder %s124, 1
        %s128 = scalar_select %p127, %s124, 1
        %s129 = smul.addr %s126, 2
        %s130 = sadd.s32 %s128, %s129
        %s131 = smul.addr %s130, 4
        %s132 = scalar_lea.vmem %s0, %s131
        %s133 = smul.u32 2, %s16
      $region20: #{dice_loss.1} parent=15 // pred_fallthru
        _
      // Predicated region
      $region21: #{dice_loss.1} parent=15 // pred_check
        %p134 = pneg %p70
      $region22: #{dice_loss.1} parent=15 // pred_check_branch
        %136 = sbr.rel (%p134) target = $region24
      $region23: #{dice_loss.1} parent=15 // pred_region
        %s137 = smul.u32 2, %s16
        %p138 = scmp.lt.s32.totalorder %s15, 1
        %s139 = scalar_select %p138, %s15, 1
        %p140 = scmp.lt.s32.totalorder %s137, 1
        %s141 = scalar_select %p140, %s137, 1
        %s142 = smul.addr %s139, 2
        %s143 = sadd.s32 %s141, %s142
        %s144 = scalar_lea.vmem %s1, %s143
        %s145 = smul.u32 2, %s16
      $region24: #{dice_loss.1} parent=15 // pred_fallthru
        _
    $region16: #{dice_loss.1} parent=5 // pred_fallthru
      _
    %p146 = scmp.le.s32.totalorder 1, %s8
    %p147 = scmp.lt.s32.totalorder %s8, 3
    %p148 = pnand %p146, %p147
    %p149 = pneg %p148
    // Predicated region
    $region25: #{dice_loss.1} parent=5 // pred_check
      _
    $region26: #{dice_loss.1} parent=5 // pred_check_branch
      %151 = sbr.rel (%p148) target = $region28
    $region27: #{dice_loss.1} parent=5 // pred_region
      %s152 = ssub.s32 %s8, 1
      %s153 = smul.u32 2, %s18
      %p154 = scmp.lt.s32.totalorder %s17, 1
      %s155 = scalar_select %p154, %s17, 1
      %p156 = scmp.lt.s32.totalorder %s153, 1
      %s157 = scalar_select %p156, %s153, 1
      %s158 = smul.addr %s155, 2
      %s159 = sadd.s32 %s157, %s158
      %s160 = smul.addr %s159, 4
      %s161 = scalar_lea.vmem %s0, %s160
      %p162 = pneg %p48
      %p163 = pneg %p45
      %s164 = smul.u32 2, %s18
      %p165 = scmp.lt.s32.totalorder %s17, 1
      %s166 = scalar_select %p165, %s17, 1
      %p167 = scmp.lt.s32.totalorder %s164, 1
      %s168 = scalar_select %p167, %s164, 1
      %s169 = smul.addr %s166, 2
      %s170 = sadd.s32 %s168, %s169
      %s171 = scalar_lea.vmem %s1, %s170
      %p172 = pneg %p76
      %p173 = pneg %p73
      %p174 = pneg %p102
      %p175 = pneg %p99
      %p176 = scmp.lt.s32.totalorder %s17, 1
      %s177 = scalar_select %p176, %s17, 1
      %s178 = smul.addr %s177, 4
      %s179 = scalar_lea.vmem %s2, %s178
      %s180 = smul.u32 2, %s18
      %p181 = scmp.lt.s32.totalorder %s17, 1
      %s182 = scalar_select %p181, %s17, 1
      %p183 = scmp.lt.s32.totalorder %s180, 1
      %s184 = scalar_select %p183, %s180, 1
      %s185 = smul.addr %s182, 2
      %s186 = sadd.s32 %s184, %s185
      %s187 = smul.addr %s186, 4
      %s188 = scalar_lea.vmem %s0, %s187
      %s189 = smul.u32 2, %s18
      %s190 = smul.u32 2, %s18
      %p191 = scmp.lt.s32.totalorder %s17, 1
      %s192 = scalar_select %p191, %s17, 1
      %p193 = scmp.lt.s32.totalorder %s190, 1
      %s194 = scalar_select %p193, %s190, 1
      %s195 = smul.addr %s192, 2
      %s196 = sadd.s32 %s194, %s195
      %s197 = scalar_lea.vmem %s1, %s196
      %s198 = smul.u32 2, %s18
      %p199 = scmp.lt.s32.totalorder %s17, 1
      %s200 = scalar_select %p199, %s17, 1
      %s201 = smul.addr %s200, 4
      %s202 = scalar_lea.vmem %s2, %s201
      %p203 = scmp.eq.s32.totalorder %s18, 0
      // Predicated region
      $region29: #{dice_loss.1} parent=27 // pred_check
        %p204 = pneg %p203
      $region30: #{dice_loss.1} parent=27 // pred_check_branch
        %206 = sbr.rel (%p204) target = $region32
      $region31: #{dice_loss.1} parent=27 // pred_region
        %vm207 = vcmask 19456
        %208 = vst.msk [vmem:[%s202] sm:$0xf] %vm207, 0.0
      $region32: #{dice_loss.1} parent=27 // pred_fallthru
        _
      %v209 = vld [vmem:[%s188] sm:$0xff]
      %v210 = vld [vmem:[%s197] sm:$0x3]
      %v211 = vlaneseq
      %v212 = vshrl.u32 %v211, 7
      %v213 = vlaneseq
      %v214 = vshrl.u32 %v213, 7
      %v215 = vsub.s32 0, %v214
      %v216 = vrot.slane %v210, %v215
      %v217 = vlaneseq
      %v218 = vshrl.u32 %v217, 7
      %v219 = vsub.s32 1, %v218
      %v220 = vrot.slane %v210, %v219
      %vm221 = vcmp.eq.s32.totalorder %v216, %v212
      %vm222 = vcmp.eq.s32.totalorder %v220, %v212
      %v224 = vcombine.high %v209, %v209
      %v226 = vsel %vm221, %v209, 0.0
      %v227 = vsel %vm222, %v224, 0.0
      %vm228 = vcmask 1043456
      %v229 = vsel %vm228, %v226, 0.0
      %v230 = vsel %vm228, %v227, 0.0
      %v231 = vadd.f32 %v229, %v230
      %232 = vadd.xlane.f32.xlu0 %v231
      %v233 = vpop.xlane.xlu0 %232
      %v234 = vmul.f32 %v209, %v209
      %v236 = vcombine.high %v234, %v234
      %v238 = vsel %vm228, %v234, 0.0
      %v239 = vsel %vm228, %v236, 0.0
      %v240 = vadd.f32 %v238, %v239
      %241 = vadd.xlane.f32.xlu0 %v240
      %v242 = vpop.xlane.xlu0 %241
      %v243 = vsel %vm221, 1, 0
      %v244 = vsel %vm222, 1, 0
      %v245 = vcvt.s32.f32 %v243
      %v246 = vcvt.s32.f32 %v244
      %v247 = vsel %vm228, %v245, 0.0
      %v248 = vsel %vm228, %v246, 0.0
      %v249 = vadd.f32 %v247, %v248
      %250 = vadd.xlane.f32.xlu0 %v249
      %v251 = vpop.xlane.xlu0 %250
      %v252 = vld [vmem:[%s202] sm:$0xf]
      %vm253 = vcmask 7168
      %v254 = vsel %vm253, %v233, %v242
      %vm255 = vcmask 15360
      %v256 = vsel %vm255, %v254, %v251
      %v257 = vadd.f32 %v252, %v256
      %vm258 = vcmask 19456
      %259 = vst.msk [vmem:[%s202] sm:$0xf] %vm258, %v257
      %p260 = scmp.lt.s32.totalorder %s17, 1
      %s261 = scalar_select %p260, %s17, 1
      %s262 = smul.addr %s261, 4
      %s263 = scalar_lea.vmem %s2, %s262
      // Predicated region
      $region33: #{dice_loss.1} parent=27 // pred_check
        %p264 = pneg %p99
      $region34: #{dice_loss.1} parent=27 // pred_check_branch
        %266 = sbr.rel (%p264) target = $region36
      $region35: #{dice_loss.1} parent=27 // pred_region
        _
      $region36: #{dice_loss.1} parent=27 // pred_fallthru
        _
    $region28: #{dice_loss.1} parent=5 // pred_fallthru
      _
    %p267 = scmp.le.s32.totalorder 2, %s8
    // Predicated region
    $region37: #{dice_loss.1} parent=5 // pred_check
      %p268 = pneg %p267
    $region38: #{dice_loss.1} parent=5 // pred_check_branch
      %270 = sbr.rel (%p268) target = $region40
    $region39: #{dice_loss.1} parent=5 // pred_region
      %s271 = ssub.s32 %s8, 2
      // Predicated region
      $region41: #{dice_loss.1} parent=39 // pred_check
        %p272 = pneg %p105
      $region42: #{dice_loss.1} parent=39 // pred_check_branch
        %274 = sbr.rel (%p272) target = $region44
      $region43: #{dice_loss.1} parent=39 // pred_region
        %p275 = scmp.lt.s32.totalorder %s19, 1
        %s276 = scalar_select %p275, %s19, 1
        %s277 = smul.addr %s276, 4
        %s278 = scalar_lea.vmem %s2, %s277
      $region44: #{dice_loss.1} parent=39 // pred_fallthru
        _
    $region40: #{dice_loss.1} parent=5 // pred_fallthru
      _
  $region6: #{dice_loss.1} parent=0 // loop_footer
    %s12 = sadd.s32 1, %s8
  $region7: #{dice_loss.1} parent=0 // loop_footer_branch
    %7 = sbr.rel target = $region3
  $region8: #{dice_loss.1} parent=0 // loop_exit
    _

</llo_original>
